<compile_context>
chip_gen: v7x
topology: tpu7x:2x2x1
jax: 0.10.0
libtpu: 0.0.40
codegen_flags: <defaults>
</compile_context>

<pallas_src>
import jax
import jax.numpy as jnp
from jax.experimental import pallas as pl
from jax.experimental.pallas import tpu as pltpu

_LANE = 512                      # lane-dense last dim (multiple of 128)
_TARGET_BLOCK_BYTES = 4 << 20    # ~4 MiB per block
_VMEM_FLOOR = 16 << 20           # never ask for less than the default-ish limit
_VMEM_CEIL = 48 << 20            # stay safely inside v7x's 64 MiB per-TC VMEM


def silu_kernel(x_ref, o_ref):
    # SiLU / swish: x * sigmoid(x). Compute in f32 for accuracy, cast back.
    xf = x_ref[...].astype(jnp.float32)
    o_ref[...] = (xf * jax.nn.sigmoid(xf)).astype(o_ref.dtype)


def _num_tensorcores() -> int:
    """Best-effort TensorCores-per-device count (1 on v5e/v6e, 2 on v7x)."""
    try:
        info = pltpu.get_tpu_info()
        for attr in ("num_cores", "core_count", "num_tensorcores",
                     "tensor_cores_per_chip", "cores_per_chip",
                     "num_cores_per_chip"):
            v = getattr(info, attr, None)
            if isinstance(v, int) and v > 0:
                return v
    except Exception:
        pass
    try:
        kind = jax.devices()[0].device_kind.lower()
        if "v7" in kind or "7x" in kind:
            return 2
    except Exception:
        pass
    return 1


def _sublane_granule(itemsize: int) -> int:
    # 32-bit -> 8 rows/vreg, 16-bit -> 16, 8-bit -> 32 (packed along sublanes).
    return max(8, 32 // max(1, itemsize))


def _silu_2d(x2d: jax.Array) -> jax.Array:
    """Run the Pallas kernel on a lane-dense (rows, _LANE) slab."""
    rows, lane = x2d.shape
    assert lane == _LANE
    dtype = x2d.dtype
    itemsize = dtype.itemsize
    granule = _sublane_granule(itemsize)

    # ---- Row tile from a ~4 MiB byte budget (rounded to the packing granule)
    max_rows = max(
        granule,
        (_TARGET_BLOCK_BYTES // (_LANE * itemsize)) // granule * granule,
    )
    row_tile = min(rows, max_rows)

    # ---- Minimum-steps cap only where there are multiple TensorCores -------
    num_cores = _num_tensorcores()
    if num_cores > 1:
        min_steps = 2 * num_cores           # 2 steps/TC: enough to shard+pipeline
        if rows >= min_steps * granule:
            per_step = max(granule, (rows // min_steps) // granule * granule)
            row_tile = min(row_tile, per_step)

    grid = (pl.cdiv(rows, row_tile),)       # partial last row-block is masked

    # ---- VMEM limit derived from the block size (2x in + 2x out buffers) ---
    block_bytes = row_tile * _LANE * itemsize
    vmem_limit = min(_VMEM_CEIL, max(_VMEM_FLOOR, 4 * block_bytes + (8 << 20)))

    n_elems = rows * _LANE
    cost = pl.CostEstimate(
        flops=5 * n_elems,
        transcendentals=n_elems,
        bytes_accessed=2 * n_elems * itemsize,
    )

    return pl.pallas_call(
        silu_kernel,
        out_shape=jax.ShapeDtypeStruct((rows, _LANE), dtype),
        grid_spec=pltpu.PrefetchScalarGridSpec(
            num_scalar_prefetch=0,
            grid=grid,
            in_specs=[pl.BlockSpec((row_tile, _LANE), lambda i: (i, 0))],
            out_specs=pl.BlockSpec((row_tile, _LANE), lambda i: (i, 0)),
        ),
        compiler_params=pltpu.CompilerParams(
            dimension_semantics=("parallel",),
            vmem_limit_bytes=vmem_limit,
        ),
        cost_estimate=cost,
    )(x2d)


def _silu_xla(x: jax.Array) -> jax.Array:
    # Plain-XLA fallback for tiny / ragged tails (matches kernel numerics).
    xf = x.astype(jnp.float32)
    return (xf * jax.nn.sigmoid(xf)).astype(x.dtype)


def silu(x: jax.Array) -> jax.Array:
    orig_shape = x.shape
    n = x.size
    if n == 0:
        return x

    flat = x.reshape(-1)
    n_main = (n // _LANE) * _LANE

    if n_main == 0:
        # Fewer than one lane-row of data: not worth a kernel launch.
        return _silu_xla(x)

    if n_main == n:
        # Aligned (the common case for transformer activations): free reshape,
        # no pad, no slice.
        out2d = _silu_2d(flat.reshape(-1, _LANE))
        return out2d.reshape(orig_shape)

    # Ragged: kernel on the 512-aligned prefix, plain XLA on the (<512) tail.
    # Avoids the extra full read+write passes a pad + output-slice would cost.
    main = flat[:n_main]
    tail = flat[n_main:]
    out_main = _silu_2d(main.reshape(-1, _LANE)).reshape(-1)
    out_tail = _silu_xla(tail)
    return jnp.concatenate([out_main, out_tail]).reshape(orig_shape)


if __name__ == "__main__":
    key = jax.random.PRNGKey(0)

    # batch=2, seq=8, hidden=128 (small shape consistent with the module).
    x = jax.random.normal(key, (2, 8, 128), dtype=jnp.float32)
    y = jax.block_until_ready(silu(x))
    y_ref = x * jax.nn.sigmoid(x)
    assert y.shape == x.shape and y.dtype == x.dtype
    assert jnp.allclose(y, y_ref, atol=1e-6, rtol=1e-6)

    # Ragged bf16 shape: exercises the aligned-prefix + XLA-tail path.
    xr = jax.random.normal(jax.random.PRNGKey(1), (2, 700), dtype=jnp.bfloat16)
    yr = jax.block_until_ready(silu(xr))
    xr32 = xr.astype(jnp.float32)
    yr_ref = xr32 * jax.nn.sigmoid(xr32)
    assert yr.shape == xr.shape and yr.dtype == xr.dtype
    assert jnp.allclose(yr.astype(jnp.float32), yr_ref, atol=2e-2, rtol=2e-2)

    print("KERNEL_OK")
</pallas_src>

<mosaic_0001>
module attributes {stable_mosaic.version = 11 : i64} {
  func.func @silu_kernel(%arg0: i32, %arg1: memref<4x512xf32, #tpu.memory_space<vmem>>, %arg2: memref<4x512xf32, #tpu.memory_space<vmem>>) attributes {dimension_semantics = [#tpu.dimension_semantics<parallel>], iteration_bounds = array<i64: 1>, scalar_prefetch = 0 : i64, scratch_operands = 0 : i64, tpu.core_type = #tpu.core_type<tc>, window_params = [{transform_indices = @transform_0, window_bounds = array<i64: 4, 512>}, {transform_indices = @transform_1, window_bounds = array<i64: 4, 512>}]} {
    %c0 = arith.constant 0 : index
    %c0_0 = arith.constant 0 : index
    %0 = vector.load %arg1[%c0, %c0_0] : memref<4x512xf32, #tpu.memory_space<vmem>>, vector<4x512xf32>
    %1 = arith.negf %0 : vector<4x512xf32>
    %2 = math.exp %1 : vector<4x512xf32>
    %cst = arith.constant 1.000000e+00 : f32
    %3 = vector.broadcast %cst : f32 to vector<4x512xf32>
    %4 = arith.addf %3, %2 : vector<4x512xf32>
    %5 = arith.divf %3, %4 : vector<4x512xf32>
    %6 = arith.mulf %0, %5 : vector<4x512xf32>
    %c0_1 = arith.constant 0 : index
    %c0_2 = arith.constant 0 : index
    %7 = vector.load %arg2[%c0_1, %c0_2] : memref<4x512xf32, #tpu.memory_space<vmem>>, vector<4x512xf32>
    tpu.vector_store %arg2[%c0_1, %c0_2], %6 {strides = array<i32>} : memref<4x512xf32, #tpu.memory_space<vmem>>, vector<4x512xf32>,
    return
  }
  func.func @transform_0(%arg0: i32) -> (i32, i32) {
    %c0_i32 = arith.constant 0 : i32
    %c0_i32_0 = arith.constant 0 : i32
    return %arg0, %c0_i32 : i32, i32
  }
  func.func @transform_1(%arg0: i32) -> (i32, i32) {
    %c0_i32 = arith.constant 0 : i32
    %c0_i32_0 = arith.constant 0 : i32
    return %arg0, %c0_i32 : i32, i32
  }
}

</mosaic_0001>

<llo_original>
// kernel: tpu_custom_call.1
$region0: #{tpu_custom_call.1}
  #allocation0 [shape = 'u32[]', space=smem, size = 0x4, offset = 0x4, fixed_abs, tag = 'smem constant byte address 0x4 - core index']
  #allocation1 [shape = 'u32[144,128]{1,0:T(1,128)}', space=vmem, size = 0x12000, scoped, tag = 'internal scratch']
  %s0 = inlined_call_operand.hbm [shape: f32[4,512], index: 0, kind: input, shape index: {}]
  %s1 = inlined_call_operand.hbm [shape: f32[4,512], index: 1, kind: output, shape index: {}]
  %s2 = sld [smem:[#allocation0]]
  $region18: #{tpu_custom_call.1} parent=0
    _
  %s4 = ssub.s32 1, %s2
  %s5 = scalar_select 0, %s4, %s2
  $region1: #{tpu_custom_call.1} parent=0
    #allocation2 [shape = 'u8[8192]{0}', space=vmem, size = 0x2000, scoped, tag = 'input window, operand 0, single buffered']
    #allocation3 [shape = 's32[1]{0}', space=sflag, size = 0x4, scoped, tag = 'scoped memory for tpu_custom_call.1']
    #allocation4 [shape = 's32[1]{0}', space=sflag, size = 0x4, scoped, tag = 'scoped memory for tpu_custom_call.1']
    #allocation5 [shape = 'u8[8192]{0}', space=vmem, size = 0x2000, scoped, tag = 'output window, operand 0, single buffered']
    %6 = vsyncpa [#allocation3], 0
    %7 = vsyncpa [#allocation4], 0
    // Predicated region
    $region2: #{tpu_custom_call.1} parent=1 // pred_check
      _
    $region3: #{tpu_custom_call.1} parent=1 // pred_check_branch
      %9 = sbr.rel (0) target = $region5
    $region4: #{tpu_custom_call.1} parent=1 // pred_region
      %s11 = ssub.s32 256, 256
      %12 = vsyncadd [#allocation3], %s11
      %s14 = sshll.u32 [#allocation2], 4
      %s15 = int_to_ptr.vmem [resolvable:$true] %s14
      %17 = dma.hbm_to_vmem [thread:$0]  %s0, 256, %s15, [#allocation3]
    $region5: #{tpu_custom_call.1} parent=1 // pred_fallthru
      _
    // Predicated region
    $region6: #{tpu_custom_call.1} parent=1 // pred_check
      _
    $region7: #{tpu_custom_call.1} parent=1 // pred_check_branch
      %19 = sbr.rel (0) target = $region9
    $region8: #{tpu_custom_call.1} parent=1 // pred_region
      %20 = dma.done [#allocation3], 256
    $region9: #{tpu_custom_call.1} parent=1 // pred_fallthru
      _
    %v21 = vld [vmem:[#allocation2] sm:$0xff]
    %v22 = vld [vmem:[#allocation2 + $0x8] sm:$0xff]
    %v23 = vxor.u32 %v21, 2147483648
    %v24 = vxor.u32 %v22, 2147483648
    %v25 = vmul.f32 %v23, 1.442695
    %v26 = vpow.pop %v25
    %v27 = vmul.f32 %v24, 1.442695
    %v28 = vpow.pop %v27
    %v29 = vadd.f32 %v26, 1.0
    %v30 = vadd.f32 %v28, 1.0
    %v31 = vrcp.pop %v29
    %v32 = vmul.f32 1.0, %v31
    %v33 = vrcp.pop %v30
    %v34 = vmul.f32 1.0, %v33
    %v35 = vmul.f32 %v21, %v32
    %v36 = vmul.f32 %v22, %v34
    %37 = vst [vmem:[#allocation5] sm:$0xff] %v35
    %38 = vst [vmem:[#allocation5 + $0x8] sm:$0xff] %v36
    // Predicated region
    $region10: #{tpu_custom_call.1} parent=1 // pred_check
      _
    $region11: #{tpu_custom_call.1} parent=1 // pred_check_branch
      %40 = sbr.rel (0) target = $region13
    $region12: #{tpu_custom_call.1} parent=1 // pred_region
      %s42 = ssub.s32 256, 256
      %43 = vsyncadd [#allocation4], %s42
      %s45 = sshll.u32 [#allocation5], 4
      %s46 = int_to_ptr.vmem [resolvable:$true] %s45
      %48 = dma.vmem_to_hbm [thread:$0]  %s46, 256, %s1, [#allocation4]
    $region13: #{tpu_custom_call.1} parent=1 // pred_fallthru
      _
    // Predicated region
    $region14: #{tpu_custom_call.1} parent=1 // pred_check
      _
    $region15: #{tpu_custom_call.1} parent=1 // pred_check_branch
      %50 = sbr.rel (0) target = $region17
    $region16: #{tpu_custom_call.1} parent=1 // pred_region
      %51 = dma.done [#allocation4], 256
    $region17: #{tpu_custom_call.1} parent=1 // pred_fallthru
      _
    %52 = vsyncpa [#allocation3], 1
    %53 = vsyncpa [#allocation4], 1

</llo_original>
